<compile_context>
chip_gen: v5e
topology: v5e:2x2
jax: 0.10.0
libtpu: 0.0.40
codegen_flags: <defaults>
</compile_context>

<pallas_src>
import functools

import jax
import jax.numpy as jnp
import numpy as np
from jax.experimental import pallas as pl
from jax.experimental.pallas import tpu as pltpu


_FUSED_BLOCK_BYTES = 8 * 1024 * 1024    # use fused path while C*HW*item <= this
_TILE_BUDGET_BYTES = 6 * 1024 * 1024    # per-block budget for the fallback path
_VMEM_LIMIT_BYTES = 48 * 1024 * 1024    # < v7x 64 MiB physical VMEM


# --------------------------------------------------------------------------
# Shared squeeze-excite gate math (per batch element, all f32, tiny shapes)
# --------------------------------------------------------------------------
def _se_gate(p, w1t, w2):
    """p: (C, 1) channel means; w1t: (C, Cr) = W1^T; w2: (C, Cr) = W2.

    Returns sigmoid(W2 @ relu(W1 @ p)) as (C, 1) f32.
    Uses broadcast-multiply + sublane/lane reductions: intermediates are only
    (C, Cr) / (1, Cr) regardless of batch, so footprint is flat in N.
    """
    h = jnp.maximum(jnp.sum(w1t * p, axis=0, keepdims=True), 0.0)   # (1, Cr)
    logits = jnp.sum(w2 * h, axis=1, keepdims=True)                 # (C, 1)
    return jax.nn.sigmoid(logits)                                   # (C, 1)


# --------------------------------------------------------------------------
# Fused kernel: pool + gate + apply in one pass (grid = (N,))
# --------------------------------------------------------------------------
def _fused_kernel(x_ref, w1t_ref, w2_ref, o_ref, *, inv_hw):
    # x_ref/o_ref: (C, HW) in x's native dtype; w1t/w2: (C, Cr)
    x = x_ref[...]
    p = jnp.sum(x, axis=-1, keepdims=True, dtype=jnp.float32) * inv_hw   # (C, 1) mean
    g = _se_gate(p,
                 w1t_ref[...].astype(jnp.float32),
                 w2_ref[...].astype(jnp.float32))                        # (C, 1) f32
    o_ref[...] = x * g.astype(x.dtype)                                   # lane broadcast


# --------------------------------------------------------------------------
# Fallback kernels (3 passes) for activations too large to keep resident
# --------------------------------------------------------------------------
def _pool_kernel(x_ref, o_ref, *, hw, tile_hw):
    # x_ref: (C, tile_hw) native dtype; o_ref: (C, 1) f32 sum accumulator
    t = pl.program_id(1)
    x = x_ref[...]
    if hw % tile_hw != 0:
        # Ragged tail: zero out the lanes past the logical HW extent so the
        # partial-block garbage does not pollute the sum.
        col = jax.lax.broadcasted_iota(jnp.int32, x.shape, dimension=1)
        x = jnp.where(t * tile_hw + col < hw, x, jnp.zeros((), x.dtype))
    partial = jnp.sum(x, axis=-1, keepdims=True, dtype=jnp.float32)

    @pl.when(t == 0)
    def _():
        o_ref[...] = partial

    @pl.when(t > 0)
    def _():
        o_ref[...] += partial


def _gate_kernel(pooled_ref, w1t_ref, w2_ref, gate_ref, *, inv_hw):
    # pooled_ref: (C, 1) f32 sums for ONE batch element; gate_ref: (C, 1) x-dtype
    p = pooled_ref[...] * inv_hw                                         # (C, 1) mean
    g = _se_gate(p,
                 w1t_ref[...].astype(jnp.float32),
                 w2_ref[...].astype(jnp.float32))
    gate_ref[...] = g.astype(gate_ref.dtype)


def _apply_kernel(x_ref, g_ref, o_ref):
    # x_ref: (C, tile_hw); g_ref: (C, 1).  Tail-block writes are pipeline-masked.
    o_ref[...] = x_ref[...] * g_ref[...]


# --------------------------------------------------------------------------
# Tile selection (fallback path only)
# --------------------------------------------------------------------------
def _choose_tile_hw(hw, c, itemsize, budget_bytes):
    """Largest 128-multiple HW tile with c*tile*itemsize <= budget.

    If hw fits in one block, return hw (full-dim blocks are always legal).
    If hw is a multiple of 128, prefer an exact divisor (no ragged tail).
    Otherwise return a 128-multiple tile; the caller uses a cdiv grid and the
    pool kernel masks the ragged tail.
    """
    lane_bytes = c * itemsize * 128
    max_tile = max(128, (budget_bytes // lane_bytes) * 128)
    if hw <= max_tile:
        return hw
    if hw % 128 == 0:
        for t in range(max_tile, 127, -128):
            if hw % t == 0:
                return t
    return max_tile


# --------------------------------------------------------------------------
# Wrapper
# --------------------------------------------------------------------------
def content_branch(x_nchw, w1, w2, *, force_multipass=False,
                   tile_budget_bytes=_TILE_BUDGET_BYTES):
    """x_nchw: (N, C, H, W); w1: (C//16, C); w2: (C, C//16)  (1x1-conv weights
    squeezed to 2-D).  Returns the gated activation in NCHW."""
    N, C, H, W = x_nchw.shape
    HW = H * W
    Cr = w1.shape[0]
    assert w1.shape == (Cr, C) and w2.shape == (C, Cr)

    x = x_nchw.reshape(N, C, HW)            # NCHW viewed as (N, C, HW)
    w1t = jnp.transpose(w1)                 # (C, Cr)  tiny
    itemsize = jnp.dtype(x_nchw.dtype).itemsize
    inv_hw = float(1.0 / HW)

    # ---------------- Fused single-pass path (preferred) ----------------
    if (not force_multipass) and C * HW * itemsize <= _FUSED_BLOCK_BYTES:
        out = pl.pallas_call(
            functools.partial(_fused_kernel, inv_hw=inv_hw),
            out_shape=jax.ShapeDtypeStruct((N, C, HW), x.dtype),
            grid=(N,),
            in_specs=[
                pl.BlockSpec((pl.Squeezed(), C, HW), lambda n: (n, 0, 0)),
                pl.BlockSpec((C, Cr), lambda n: (0, 0)),
                pl.BlockSpec((C, Cr), lambda n: (0, 0)),
            ],
            out_specs=pl.BlockSpec((pl.Squeezed(), C, HW), lambda n: (n, 0, 0)),
            compiler_params=pltpu.CompilerParams(
                dimension_semantics=("parallel",),
                vmem_limit_bytes=_VMEM_LIMIT_BYTES),
        )(x, w1t, w2)
        return out.reshape(N, C, H, W)

    # ---------------- 3-pass fallback for very large activations ----------------
    tile_hw = _choose_tile_hw(HW, C, itemsize, tile_budget_bytes)
    T = (HW + tile_hw - 1) // tile_hw

    # Pass 1: global average pool as f32 sum accumulator per batch element.
    pooled = pl.pallas_call(
        functools.partial(_pool_kernel, hw=HW, tile_hw=tile_hw),
        out_shape=jax.ShapeDtypeStruct((N, C, 1), jnp.float32),
        grid=(N, T),
        in_specs=[
            pl.BlockSpec((pl.Squeezed(), C, tile_hw), lambda n, t: (n, 0, t)),
        ],
        out_specs=pl.BlockSpec((pl.Squeezed(), C, 1), lambda n, t: (n, 0, 0)),
        compiler_params=pltpu.CompilerParams(
            dimension_semantics=("parallel", "arbitrary"),
            vmem_limit_bytes=_VMEM_LIMIT_BYTES),
    )(x)

    # Pass 2: squeeze-excite gate, one batch element per grid step (footprint
    # flat in N and C; no (N, C, Cr) intermediates, explicit specs).
    gate = pl.pallas_call(
        functools.partial(_gate_kernel, inv_hw=inv_hw),
        out_shape=jax.ShapeDtypeStruct((N, C, 1), x.dtype),
        grid=(N,),
        in_specs=[
            pl.BlockSpec((pl.Squeezed(), C, 1), lambda n: (n, 0, 0)),
            pl.BlockSpec((C, Cr), lambda n: (0, 0)),
            pl.BlockSpec((C, Cr), lambda n: (0, 0)),
        ],
        out_specs=pl.BlockSpec((pl.Squeezed(), C, 1), lambda n: (n, 0, 0)),
        compiler_params=pltpu.CompilerParams(
            dimension_semantics=("parallel",),
            vmem_limit_bytes=_VMEM_LIMIT_BYTES),
    )(pooled, w1t, w2)

    # Pass 3: apply the per-channel gate (native dtype, lane-dense stores).
    out = pl.pallas_call(
        _apply_kernel,
        out_shape=jax.ShapeDtypeStruct((N, C, HW), x.dtype),
        grid=(N, T),
        in_specs=[
            pl.BlockSpec((pl.Squeezed(), C, tile_hw), lambda n, t: (n, 0, t)),
            pl.BlockSpec((pl.Squeezed(), C, 1), lambda n, t: (n, 0, 0)),
        ],
        out_specs=pl.BlockSpec((pl.Squeezed(), C, tile_hw), lambda n, t: (n, 0, t)),
        compiler_params=pltpu.CompilerParams(
            dimension_semantics=("parallel", "parallel"),
            vmem_limit_bytes=_VMEM_LIMIT_BYTES),
    )(x, gate)

    return out.reshape(N, C, H, W)


# --------------------------------------------------------------------------
# Reference (host-side numpy, float64) and tests
# --------------------------------------------------------------------------
def _reference_np(x, w1, w2):
    xf = np.asarray(x, dtype=np.float64)
    w1f = np.asarray(w1, dtype=np.float64)
    w2f = np.asarray(w2, dtype=np.float64)
    pooled = xf.mean(axis=(2, 3))                       # (N, C)
    h = np.maximum(pooled @ w1f.T, 0.0)                 # (N, Cr)
    gate = 1.0 / (1.0 + np.exp(-(h @ w2f.T)))           # (N, C)
    return xf * gate[:, :, None, None]


if __name__ == "__main__":
    def run_case(shape, *, force_multipass=False,
                 tile_budget_bytes=_TILE_BUDGET_BYTES, seed=0):
        N, C, H, W = shape
        Cr = max(C // 16, 1)
        key = jax.random.PRNGKey(seed)
        kx, k1, k2 = jax.random.split(key, 3)
        x = jax.random.normal(kx, (N, C, H, W), dtype=jnp.float32)
        # Conv2d 1x1 (no bias) weights are plain matrices.
        w1 = jax.random.normal(k1, (Cr, C), dtype=jnp.float32) * (1.0 / np.sqrt(C))
        w2 = jax.random.normal(k2, (C, Cr), dtype=jnp.float32) * (1.0 / np.sqrt(Cr))

        fn = jax.jit(functools.partial(content_branch,
                                       force_multipass=force_multipass,
                                       tile_budget_bytes=tile_budget_bytes))
        out = jax.block_until_ready(fn(x, w1, w2))
        ref = _reference_np(x, w1, w2)
        assert out.shape == (N, C, H, W)
        assert np.allclose(np.asarray(out, dtype=np.float64), ref,
                           atol=1e-5, rtol=1e-5), f"mismatch for {shape}"

    # 1) Fused single-pass path (primary).
    run_case((2, 32, 16, 16))
    # 2) Fused path with a non-128-multiple spatial map (full-dim block).
    run_case((2, 32, 12, 10))
    # 3) Forced 3-pass fallback, HW divisible by 128.
    run_case((2, 32, 16, 16), force_multipass=True)
    # 4) Forced 3-pass fallback with a ragged HW tail (tiny tile budget so the
    #    128-wide tiles + cdiv grid + in-kernel masking path is exercised).
    run_case((2, 32, 17, 17), force_multipass=True, tile_budget_bytes=16 * 1024)

    print("KERNEL_OK")
</pallas_src>

<mosaic_0001>
module attributes {stable_mosaic.version = 11 : i64} {
  func.func @_fused_kernel(%arg0: i32, %arg1: memref<1x32x256xf32, #tpu.memory_space<vmem>>, %arg2: memref<32x2xf32, #tpu.memory_space<vmem>>, %arg3: memref<32x2xf32, #tpu.memory_space<vmem>>, %arg4: memref<1x32x256xf32, #tpu.memory_space<vmem>>) attributes {dimension_semantics = [#tpu.dimension_semantics<parallel>], iteration_bounds = array<i64: 2>, scalar_prefetch = 0 : i64, scratch_operands = 0 : i64, tpu.core_type = #tpu.core_type<tc>, window_params = [{transform_indices = @transform_0, window_bounds = array<i64: 1, 32, 256>}, {pipeline_mode = #tpu.pipeline_mode<synchronous>, transform_indices = @transform_1, window_bounds = array<i64: 32, 2>}, {pipeline_mode = #tpu.pipeline_mode<synchronous>, transform_indices = @transform_2, window_bounds = array<i64: 32, 2>}, {transform_indices = @transform_3, window_bounds = array<i64: 1, 32, 256>}]} {
    %c0 = arith.constant 0 : index
    %c0_0 = arith.constant 0 : index
    %c0_1 = arith.constant 0 : index
    %0 = vector.load %arg1[%c0, %c0_0, %c0_1] : memref<1x32x256xf32, #tpu.memory_space<vmem>>, vector<1x32x256xf32>
    %1 = vector.shape_cast %0 : vector<1x32x256xf32> to vector<32x256xf32>
    %cst = arith.constant dense<0.000000e+00> : vector<32xf32>
    %2 = vector.multi_reduction <add>, %1, %cst [1] : vector<32x256xf32> to vector<32xf32>
    %3 = vector.shape_cast %2 : vector<32xf32> to vector<32x1xf32>
    %cst_2 = arith.constant 3.906250e-03 : f32
    %4 = vector.broadcast %cst_2 : f32 to vector<32x1xf32>
    %5 = arith.mulf %3, %4 : vector<32x1xf32>
    %c0_3 = arith.constant 0 : index
    %c0_4 = arith.constant 0 : index
    %6 = vector.load %arg2[%c0_3, %c0_4] : memref<32x2xf32, #tpu.memory_space<vmem>>, vector<32x2xf32>
    %c0_5 = arith.constant 0 : index
    %c0_6 = arith.constant 0 : index
    %7 = vector.load %arg3[%c0_5, %c0_6] : memref<32x2xf32, #tpu.memory_space<vmem>>, vector<32x2xf32>
    %8 = vector.broadcast %5 : vector<32x1xf32> to vector<32x2xf32>
    %9 = arith.mulf %6, %8 : vector<32x2xf32>
    %cst_7 = arith.constant dense<0.000000e+00> : vector<2xf32>
    %10 = vector.multi_reduction <add>, %9, %cst_7 [0] : vector<32x2xf32> to vector<2xf32>
    %11 = vector.shape_cast %10 : vector<2xf32> to vector<1x2xf32>
    %cst_8 = arith.constant 0.000000e+00 : f32
    %12 = vector.broadcast %cst_8 : f32 to vector<1x2xf32>
    %13 = arith.maximumf %11, %12 : vector<1x2xf32>
    %14 = vector.broadcast %13 : vector<1x2xf32> to vector<32x2xf32>
    %15 = arith.mulf %7, %14 : vector<32x2xf32>
    %cst_9 = arith.constant dense<0.000000e+00> : vector<32xf32>
    %16 = vector.multi_reduction <add>, %15, %cst_9 [1] : vector<32x2xf32> to vector<32xf32>
    %17 = vector.shape_cast %16 : vector<32xf32> to vector<32x1xf32>
    %18 = arith.negf %17 : vector<32x1xf32>
    %19 = math.exp %18 : vector<32x1xf32>
    %cst_10 = arith.constant 1.000000e+00 : f32
    %20 = vector.broadcast %cst_10 : f32 to vector<32x1xf32>
    %21 = arith.addf %20, %19 : vector<32x1xf32>
    %22 = arith.divf %20, %21 : vector<32x1xf32>
    %23 = vector.broadcast %22 : vector<32x1xf32> to vector<32x256xf32>
    %24 = arith.mulf %1, %23 : vector<32x256xf32>
    %c0_11 = arith.constant 0 : index
    %c0_12 = arith.constant 0 : index
    %c0_13 = arith.constant 0 : index
    %25 = vector.load %arg4[%c0_11, %c0_12, %c0_13] : memref<1x32x256xf32, #tpu.memory_space<vmem>>, vector<1x32x256xf32>
    %26 = vector.shape_cast %25 : vector<1x32x256xf32> to vector<32x256xf32>
    %27 = vector.shape_cast %24 : vector<32x256xf32> to vector<1x32x256xf32>
    tpu.vector_store %arg4[%c0_11, %c0_12, %c0_13], %27 {strides = array<i32>} : memref<1x32x256xf32, #tpu.memory_space<vmem>>, vector<1x32x256xf32>,
    return
  }
  func.func @transform_0(%arg0: i32) -> (i32, i32, i32) {
    %c0_i32 = arith.constant 0 : i32
    %c0_i32_0 = arith.constant 0 : i32
    %c0_i32_1 = arith.constant 0 : i32
    return %arg0, %c0_i32, %c0_i32_0 : i32, i32, i32
  }
  func.func @transform_1(%arg0: i32) -> (i32, i32) {
    %c0_i32 = arith.constant 0 : i32
    %c0_i32_0 = arith.constant 0 : i32
    %c0_i32_1 = arith.constant 0 : i32
    return %c0_i32, %c0_i32_0 : i32, i32
  }
  func.func @transform_2(%arg0: i32) -> (i32, i32) {
    %c0_i32 = arith.constant 0 : i32
    %c0_i32_0 = arith.constant 0 : i32
    %c0_i32_1 = arith.constant 0 : i32
    return %c0_i32, %c0_i32_0 : i32, i32
  }
  func.func @transform_3(%arg0: i32) -> (i32, i32, i32) {
    %c0_i32 = arith.constant 0 : i32
    %c0_i32_0 = arith.constant 0 : i32
    %c0_i32_1 = arith.constant 0 : i32
    return %arg0, %c0_i32, %c0_i32_0 : i32, i32, i32
  }
}

</mosaic_0001>

<llo_original>
// kernel: content_branch.1
$region0: #{content_branch.1}
  #allocation0 [shape = 'u32[]', space=smem, size = 0x4, offset = 0x4, fixed_abs, tag = 'smem constant byte address 0x4 - core index']
  #allocation1 [shape = 'u32[72,128]{1,0:T(1,128)}', space=vmem, size = 0x9000, scoped, tag = 'internal scratch']
  %s0 = inlined_call_operand.vmem [shape: f32[2,32,256], index: 0, kind: input, shape index: {}]
  %s1 = inlined_call_operand.vmem [shape: f32[32,2], index: 1, kind: input, shape index: {}]
  %s2 = inlined_call_operand.vmem [shape: f32[32,2], index: 2, kind: input, shape index: {}]
  %s3 = inlined_call_operand.vmem [shape: f32[2,32,256], index: 3, kind: output, shape index: {}]
  %s4 = sld [smem:[#allocation0]]
  $region45: #{content_branch.1} parent=0
    _
  %s6 = ssub.s32 1, %s4
  %s7 = scalar_select 0, %s6, %s4
  loop: start=0, step=1, limit=4
  $region2: #{content_branch.1} parent=0 // loop_pre_header
    _
  $region3: #{content_branch.1} parent=0 // loop_header
    %s9 = sphi 0, %s13
    %p10 = scmp.ge.s32.totalorder %s9, 4
    %s19 = sphi 0, %s21
    %s22 = sphi 0, %s19
    %s23 = sphi 0, %s22
    %s39 = sphi 0, %s23
    %s43 = sphi 0, %s43
    %s45 = sphi 0, %s43
    %s46 = sphi 0, %s45
    %s60 = sphi 0, %s46
    %s64 = sphi 0, %s64
    %s66 = sphi 0, %s64
    %s67 = sphi 0, %s66
    %s81 = sphi 0, %s67
    %s87 = sphi 0, %s89
    %s90 = sphi 0, %s87
    %s91 = sphi 0, %s90
    %s107 = sphi 0, %s91
  $region4: #{content_branch.1} parent=0 // loop_header_branch
    %12 = sbr.rel (%p10) target = $region8
  $region5: #{content_branch.1} parent=0 // loop_body
    %s14 = ssub.s32 %s9, 1
    %s15 = ssub.s32 %s9, 2
    %s16 = sadd.s32 %s9, 1
    %s17 = ssub.s32 %s9, %s16
    %p18 = scmp.eq.s32.totalorder %s17, 0
    %s20 = sadd.s32 %s19, 1
    %s21 = scalar_select %p18, %s19, %s20
    %p24 = pneg %p18
    %p25 = scmp.eq.s32.totalorder %s9, 1
    %p26 = por %p24, %p25
    %p27 = scmp.ne.s32.totalorder %s19, %s22
    %p28 = scmp.eq.s32.totalorder %s9, 0
    %p29 = por %p27, %p28
    %p30 = scmp.ne.s32.totalorder %s19, %s22
    %p31 = scmp.eq.s32.totalorder %s14, 1
    %p32 = por %p30, %p31
    %p33 = scmp.ne.s32.totalorder %s22, %s23
    %p34 = scmp.eq.s32.totalorder %s14, 0
    %p35 = por %p33, %p34
    %p36 = scmp.ne.s32.totalorder %s22, %s23
    %p37 = scmp.eq.s32.totalorder %s15, 1
    %p38 = por %p36, %p37
    %p40 = scmp.ne.s32.totalorder %s23, %s39
    %p41 = scmp.eq.s32.totalorder %s15, 0
    %p42 = por %p40, %p41
    %s44 = sadd.s32 %s43, 1
    %p47 = scmp.eq.s32.totalorder %s9, 1
    %p48 = scmp.ne.s32.totalorder %s43, %s45
    %p49 = scmp.eq.s32.totalorder %s9, 0
    %p50 = por %p48, %p49
    %p51 = scmp.ne.s32.totalorder %s43, %s45
    %p52 = scmp.eq.s32.totalorder %s14, 1
    %p53 = por %p51, %p52
    %p54 = scmp.ne.s32.totalorder %s45, %s46
    %p55 = scmp.eq.s32.totalorder %s14, 0
    %p56 = por %p54, %p55
    %p57 = scmp.ne.s32.totalorder %s45, %s46
    %p58 = scmp.eq.s32.totalorder %s15, 1
    %p59 = por %p57, %p58
    %p61 = scmp.ne.s32.totalorder %s46, %s60
    %p62 = scmp.eq.s32.totalorder %s15, 0
    %p63 = por %p61, %p62
    %s65 = sadd.s32 %s64, 1
    %p68 = scmp.eq.s32.totalorder %s9, 1
    %p69 = scmp.ne.s32.totalorder %s64, %s66
    %p70 = scmp.eq.s32.totalorder %s9, 0
    %p71 = por %p69, %p70
    %p72 = scmp.ne.s32.totalorder %s64, %s66
    %p73 = scmp.eq.s32.totalorder %s14, 1
    %p74 = por %p72, %p73
    %p75 = scmp.ne.s32.totalorder %s66, %s67
    %p76 = scmp.eq.s32.totalorder %s14, 0
    %p77 = por %p75, %p76
    %p78 = scmp.ne.s32.totalorder %s66, %s67
    %p79 = scmp.eq.s32.totalorder %s15, 1
    %p80 = por %p78, %p79
    %p82 = scmp.ne.s32.totalorder %s67, %s81
    %p83 = scmp.eq.s32.totalorder %s15, 0
    %p84 = por %p82, %p83
    %s85 = ssub.s32 %s9, %s16
    %p86 = scmp.eq.s32.totalorder %s85, 0
    %s88 = sadd.s32 %s87, 1
    %s89 = scalar_select %p86, %s87, %s88
    %p92 = pneg %p86
    %p93 = scmp.eq.s32.totalorder %s9, 1
    %p94 = por %p92, %p93
    %p95 = scmp.ne.s32.totalorder %s87, %s90
    %p96 = scmp.eq.s32.totalorder %s9, 0
    %p97 = por %p95, %p96
    %p98 = scmp.ne.s32.totalorder %s87, %s90
    %p99 = scmp.eq.s32.totalorder %s14, 1
    %p100 = por %p98, %p99
    %p101 = scmp.ne.s32.totalorder %s90, %s91
    %p102 = scmp.eq.s32.totalorder %s14, 0
    %p103 = por %p101, %p102
    %p104 = scmp.ne.s32.totalorder %s90, %s91
    %p105 = scmp.eq.s32.totalorder %s15, 1
    %p106 = por %p104, %p105
    %p108 = scmp.ne.s32.totalorder %s91, %s107
    %p109 = scmp.eq.s32.totalorder %s15, 0
    %p110 = por %p108, %p109
    %p111 = scmp.le.s32.totalorder 1, %s9
    %p112 = scmp.lt.s32.totalorder %s9, 3
    %p113 = pnand %p111, %p112
    %p114 = pneg %p113
    // Predicated region
    $region9: #{content_branch.1} parent=5 // pred_check
      _
    $region10: #{content_branch.1} parent=5 // pred_check_branch
      %116 = sbr.rel (%p113) target = $region12
    $region11: #{content_branch.1} parent=5 // pred_region
      %s117 = ssub.s32 %s9, 1
      // Predicated region
      $region13: #{content_branch.1} parent=11 // pred_check
        %p118 = pneg %p56
      $region14: #{content_branch.1} parent=11 // pred_check_branch
        %120 = sbr.rel (%p118) target = $region16
      $region15: #{content_branch.1} parent=11 // pred_region
        _
      $region16: #{content_branch.1} parent=11 // pred_fallthru
        _
      // Predicated region
      $region17: #{content_branch.1} parent=11 // pred_check
        %p121 = pneg %p77
      $region18: #{content_branch.1} parent=11 // pred_check_branch
        %123 = sbr.rel (%p121) target = $region20
      $region19: #{content_branch.1} parent=11 // pred_region
        _
      $region20: #{content_branch.1} parent=11 // pred_fallthru
        _
    $region12: #{content_branch.1} parent=5 // pred_fallthru
      _
    %p124 = scmp.lt.s32.totalorder %s9, 2
    // Predicated region
    $region21: #{content_branch.1} parent=5 // pred_check
      %p125 = pneg %p124
    $region22: #{content_branch.1} parent=5 // pred_check_branch
      %127 = sbr.rel (%p125) target = $region24
    $region23: #{content_branch.1} parent=5 // pred_region
      // Predicated region
      $region25: #{content_branch.1} parent=23 // pred_check
        %p128 = pneg %p29
      $region26: #{content_branch.1} parent=23 // pred_check_branch
        %130 = sbr.rel (%p128) target = $region28
      $region27: #{content_branch.1} parent=23 // pred_region
        %p131 = scmp.lt.s32.totalorder %s9, 1
        %s132 = scalar_select %p131, %s9, 1
        %s133 = smul.addr %s132, 8
        %s134 = smul.addr %s133, 8
        %s135 = scalar_lea.vmem %s0, %s134
      $region28: #{content_branch.1} parent=23 // pred_fallthru
        _
    $region24: #{content_branch.1} parent=5 // pred_fallthru
      _
    %p136 = scmp.le.s32.totalorder 1, %s9
    %p137 = scmp.lt.s32.totalorder %s9, 3
    %p138 = pnand %p136, %p137
    %p139 = pneg %p138
    // Predicated region
    $region29: #{content_branch.1} parent=5 // pred_check
      _
    $region30: #{content_branch.1} parent=5 // pred_check_branch
      %141 = sbr.rel (%p138) target = $region32
    $region31: #{content_branch.1} parent=5 // pred_region
      %s142 = ssub.s32 %s9, 1
      %p143 = scmp.lt.s32.totalorder %s14, 1
      %s144 = scalar_select %p143, %s14, 1
      %s145 = smul.addr %s144, 8
      %s146 = smul.addr %s145, 8
      %s147 = scalar_lea.vmem %s0, %s146
      %p148 = pneg %p35
      %p149 = pneg %p32
      %p150 = pneg %p56
      %p151 = pneg %p53
      %p152 = pneg %p77
      %p153 = pneg %p74
      %p154 = pneg %p103
      %p155 = pneg %p100
      %p156 = scmp.lt.s32.totalorder %s14, 1
      %s157 = scalar_select %p156, %s14, 1
      %s158 = smul.addr %s157, 8
      %s159 = smul.addr %s158, 8
      %s160 = scalar_lea.vmem %s3, %s159
      %p161 = scmp.lt.s32.totalorder %s14, 1
      %s162 = scalar_select %p161, %s14, 1
      %s163 = smul.addr %s162, 8
      %s164 = smul.addr %s163, 8
      %s165 = scalar_lea.vmem %s0, %s164
      %p166 = scmp.lt.s32.totalorder %s14, 1
      %s167 = scalar_select %p166, %s14, 1
      %s168 = smul.addr %s167, 8
      %s169 = smul.addr %s168, 8
      %s170 = scalar_lea.vmem %s3, %s169
      %v171 = vld [vmem:[%s165] sm:$0xff]
      %v172 = vld [vmem:[%s165 + $0x8] sm:$0xff]
      %v173 = vld [vmem:[%s165 + $0x10] sm:$0xff]
      %v174 = vld [vmem:[%s165 + $0x18] sm:$0xff]
      %v175 = vld [vmem:[%s165 + $0x20] sm:$0xff]
      %v176 = vld [vmem:[%s165 + $0x28] sm:$0xff]
      %v177 = vld [vmem:[%s165 + $0x30] sm:$0xff]
      %v178 = vld [vmem:[%s165 + $0x38] sm:$0xff]
      %v179 = vadd.f32 %v171, %v172
      %180 = vadd.xlane.f32.xlu0 %v179
      %v181 = vpop.xlane.xlu0 %180
      %v182 = vadd.f32 %v173, %v174
      %183 = vadd.xlane.f32.xlu0 %v182
      %v184 = vpop.xlane.xlu0 %183
      %v185 = vadd.f32 %v175, %v176
      %186 = vadd.xlane.f32.xlu0 %v185
      %v187 = vpop.xlane.xlu0 %186
      %v188 = vadd.f32 %v177, %v178
      %189 = vadd.xlane.f32.xlu0 %v188
      %v190 = vpop.xlane.xlu0 %189
      %v191 = vmul.f32 %v181, 0.00390625
      %v192 = vmul.f32 %v184, 0.00390625
      %v193 = vmul.f32 %v187, 0.00390625
      %v194 = vmul.f32 %v190, 0.00390625
      %v195 = vld [vmem:[%s1] sm:$0xff]
      %v196 = vld [vmem:[%s1 + $0x8] sm:$0xff]
      %v197 = vld [vmem:[%s1 + $0x10] sm:$0xff]
      %v198 = vld [vmem:[%s1 + $0x18] sm:$0xff]
      %v199 = vld [vmem:[%s2] sm:$0xff]
      %v200 = vld [vmem:[%s2 + $0x8] sm:$0xff]
      %v201 = vld [vmem:[%s2 + $0x10] sm:$0xff]
      %v202 = vld [vmem:[%s2 + $0x18] sm:$0xff]
      %v203 = vmul.f32 %v195, %v191
      %v204 = vmul.f32 %v196, %v192
      %v205 = vmul.f32 %v197, %v193
      %v206 = vmul.f32 %v198, %v194
      %vm207 = vcmask 15360
      %v208 = vsel %vm207, %v203, 0.0
      %v209 = vsel %vm207, %v204, 0.0
      %v210 = vadd.f32 %v208, %v209
      %v211 = vsel %vm207, %v205, 0.0
      %v212 = vadd.f32 %v210, %v211
      %v213 = vsel %vm207, %v206, 0.0
      %v214 = vadd.f32 %v212, %v213
      %v215 = vrot.slane %v214, 4
      %v216 = vadd.f32 %v214, %v215
      %v217 = vrot.slane %v216, 2
      %v218 = vadd.f32 %v216, %v217
      %v219 = vrot.slane %v218, 1
      %v220 = vadd.f32 %v218, %v219
      %v221 = vmax.f32 %v220, 0.0
      %v222 = vmul.f32 %v199, %v221
      %v223 = vmul.f32 %v200, %v221
      %v224 = vmul.f32 %v201, %v221
      %v225 = vmul.f32 %v202, %v221
      %v226 = vsel %vm207, %v222, 0.0
      %227 = vadd.xlane.f32.xlu0 %v226
      %v228 = vpop.xlane.xlu0 %227
      %v229 = vsel %vm207, %v223, 0.0
      %230 = vadd.xlane.f32.xlu0 %v229
      %v231 = vpop.xlane.xlu0 %230
      %v232 = vsel %vm207, %v224, 0.0
      %233 = vadd.xlane.f32.xlu0 %v232
      %v234 = vpop.xlane.xlu0 %233
      %v235 = vsel %vm207, %v225, 0.0
      %236 = vadd.xlane.f32.xlu0 %v235
      %v237 = vpop.xlane.xlu0 %236
      %v238 = vxor.u32 %v228, 2147483648
      %v239 = vxor.u32 %v231, 2147483648
      %v240 = vxor.u32 %v234, 2147483648
      %v241 = vxor.u32 %v237, 2147483648
      %v242 = vmul.f32 %v238, 1.442695
      %v243 = vpow.pop %v242
      %v244 = vmul.f32 %v239, 1.442695
      %v245 = vpow.pop %v244
      %v246 = vmul.f32 %v240, 1.442695
      %v247 = vpow.pop %v246
      %v248 = vmul.f32 %v241, 1.442695
      %v249 = vpow.pop %v248
      %v250 = vadd.f32 %v243, 1.0
      %v251 = vadd.f32 %v245, 1.0
      %v252 = vadd.f32 %v247, 1.0
      %v253 = vadd.f32 %v249, 1.0
      %v254 = vrcp.pop %v250
      %v255 = vmul.f32 %v250, %v254
      %v256 = vsub.f32 1.0, %v255
      %v257 = vmul.f32 %v254, %v256
      %v258 = vadd.f32 %v254, %v257
      %vm259 = vweird.f32 %v250
      %vm260 = vweird.f32 %v254
      %vm261 = vmor %vm259, %vm260
      %v262 = vsel %vm261, %v254, %v258
      %v263 = vand.u32 2147483647, %v250
      %vm264 = vcmp.eq.f32.partialorder %v263, 8.507059e+37
      %v265 = vand.u32 %v250, 2147483648
      %v266 = vor.u32 1.1754944e-38, %v265
      %v267 = vsel %vm264, %v266, %v262
      %v268 = vmul.f32 1.0, %v267
      %v269 = vrcp.pop %v251
      %v270 = vmul.f32 %v251, %v269
      %v271 = vsub.f32 1.0, %v270
      %v272 = vmul.f32 %v269, %v271
      %v273 = vadd.f32 %v269, %v272
      %vm274 = vweird.f32 %v251
      %vm275 = vweird.f32 %v269
      %vm276 = vmor %vm274, %vm275
      %v277 = vsel %vm276, %v269, %v273
      %v278 = vand.u32 2147483647, %v251
      %vm279 = vcmp.eq.f32.partialorder %v278, 8.507059e+37
      %v280 = vand.u32 %v251, 2147483648
      %v281 = vor.u32 1.1754944e-38, %v280
      %v282 = vsel %vm279, %v281, %v277
      %v283 = vmul.f32 1.0, %v282
      %v284 = vrcp.pop %v252
      %v285 = vmul.f32 %v252, %v284
      %v286 = vsub.f32 1.0, %v285
      %v287 = vmul.f32 %v284, %v286
      %v288 = vadd.f32 %v284, %v287
      %vm289 = vweird.f32 %v252
      %vm290 = vweird.f32 %v284
      %vm291 = vmor %vm289, %vm290
      %v292 = vsel %vm291, %v284, %v288
      %v293 = vand.u32 2147483647, %v252
      %vm294 = vcmp.eq.f32.partialorder %v293, 8.507059e+37
      %v295 = vand.u32 %v252, 2147483648
      %v296 = vor.u32 1.1754944e-38, %v295
      %v297 = vsel %vm294, %v296, %v292
      %v298 = vmul.f32 1.0, %v297
      %v299 = vrcp.pop %v253
      %v300 = vmul.f32 %v253, %v299
      %v301 = vsub.f32 1.0, %v300
      %v302 = vmul.f32 %v299, %v301
      %v303 = vadd.f32 %v299, %v302
      %vm304 = vweird.f32 %v253
      %vm305 = vweird.f32 %v299
      %vm306 = vmor %vm304, %vm305
      %v307 = vsel %vm306, %v299, %v303
      %v308 = vand.u32 2147483647, %v253
      %vm309 = vcmp.eq.f32.partialorder %v308, 8.507059e+37
      %v310 = vand.u32 %v253, 2147483648
      %v311 = vor.u32 1.1754944e-38, %v310
      %v312 = vsel %vm309, %v311, %v307
      %v313 = vmul.f32 1.0, %v312
      %v314 = vmul.f32 %v171, %v268
      %v315 = vmul.f32 %v172, %v268
      %v316 = vmul.f32 %v173, %v283
      %v317 = vmul.f32 %v174, %v283
      %v318 = vmul.f32 %v175, %v298
      %v319 = vmul.f32 %v176, %v298
      %v320 = vmul.f32 %v177, %v313
      %v321 = vmul.f32 %v178, %v313
      %322 = vst [vmem:[%s170] sm:$0xff] %v314
      %323 = vst [vmem:[%s170 + $0x8] sm:$0xff] %v315
      %324 = vst [vmem:[%s170 + $0x10] sm:$0xff] %v316
      %325 = vst [vmem:[%s170 + $0x18] sm:$0xff] %v317
      %326 = vst [vmem:[%s170 + $0x20] sm:$0xff] %v318
      %327 = vst [vmem:[%s170 + $0x28] sm:$0xff] %v319
      %328 = vst [vmem:[%s170 + $0x30] sm:$0xff] %v320
      %329 = vst [vmem:[%s170 + $0x38] sm:$0xff] %v321
      %p330 = scmp.lt.s32.totalorder %s14, 1
      %s331 = scalar_select %p330, %s14, 1
      %s332 = smul.addr %s331, 8
      %s333 = smul.addr %s332, 8
      %s334 = scalar_lea.vmem %s3, %s333
      // Predicated region
      $region33: #{content_branch.1} parent=31 // pred_check
        %p335 = pneg %p100
      $region34: #{content_branch.1} parent=31 // pred_check_branch
        %337 = sbr.rel (%p335) target = $region36
      $region35: #{content_branch.1} parent=31 // pred_region
        _
      $region36: #{content_branch.1} parent=31 // pred_fallthru
        _
    $region32: #{content_branch.1} parent=5 // pred_fallthru
      _
    %p338 = scmp.le.s32.totalorder 2, %s9
    // Predicated region
    $region37: #{content_branch.1} parent=5 // pred_check
      %p339 = pneg %p338
    $region38: #{content_branch.1} parent=5 // pred_check_branch
      %341 = sbr.rel (%p339) target = $region40
    $region39: #{content_branch.1} parent=5 // pred_region
      %s342 = ssub.s32 %s9, 2
      // Predicated region
      $region41: #{content_branch.1} parent=39 // pred_check
        %p343 = pneg %p106
      $region42: #{content_branch.1} parent=39 // pred_check_branch
        %345 = sbr.rel (%p343) target = $region44
      $region43: #{content_branch.1} parent=39 // pred_region
        %p346 = scmp.lt.s32.totalorder %s15, 1
        %s347 = scalar_select %p346, %s15, 1
        %s348 = smul.addr %s347, 8
        %s349 = smul.addr %s348, 8
        %s350 = scalar_lea.vmem %s3, %s349
      $region44: #{content_branch.1} parent=39 // pred_fallthru
        _
    $region40: #{content_branch.1} parent=5 // pred_fallthru
      _
  $region6: #{content_branch.1} parent=0 // loop_footer
    %s13 = sadd.s32 1, %s9
  $region7: #{content_branch.1} parent=0 // loop_footer_branch
    %8 = sbr.rel target = $region3
  $region8: #{content_branch.1} parent=0 // loop_exit
    _

</llo_original>
